<compile_context>
chip_gen: v6e
topology: v6e:2x2x1
jax: 0.10.0
libtpu: 0.0.40
codegen_flags: <defaults>
</compile_context>

<pallas_src>
import functools

import jax
import jax.numpy as jnp
from jax.experimental import pallas as pl
from jax.experimental.pallas import tpu as pltpu


# --------------------------------- kernels ---------------------------------


def _conv_tile(p_ref, w_ref):
    # (Cout, K) x (K, TM) -> (Cout, TM): one big-K MXU matmul, f32 accumulation.
    return jax.lax.dot_general(
        w_ref[...], p_ref[...],
        dimension_numbers=(((1,), (0,)), ((), ())),
        preferred_element_type=jnp.float32)


def _conv_stats_cache_kernel(p_ref, w_ref, stats_ref, cache_ref):
    acc = _conv_tile(p_ref, w_ref)                              # (Cout, TM) f32
    cache_ref[...] = acc.astype(cache_ref.dtype)                # lane-dense conv cache
    stats_ref[:, 0:1] = jnp.sum(acc, axis=1, keepdims=True)     # per-channel sum
    stats_ref[:, 1:2] = jnp.sum(acc * acc, axis=1, keepdims=True)  # per-channel sum of sq


def _conv_stats_kernel(p_ref, w_ref, stats_ref):
    acc = _conv_tile(p_ref, w_ref)
    stats_ref[:, 0:1] = jnp.sum(acc, axis=1, keepdims=True)
    stats_ref[:, 1:2] = jnp.sum(acc * acc, axis=1, keepdims=True)


def _bn_act_kernel(c_ref, scale_ref, shift_ref, o_ref, *, act):
    # Pure VPU pass: read conv cache, fused BN affine (f32) + LeakyReLU, lane-dense store.
    y = c_ref[...].astype(jnp.float32) * scale_ref[...] + shift_ref[...]
    if act:
        y = jnp.where(y >= 0, y, 0.01 * y)                      # LeakyReLU(0.01)
    o_ref[...] = y.astype(o_ref.dtype)


def _conv_bn_act_kernel(p_ref, w_ref, scale_ref, shift_ref, o_ref, *, act):
    # Recompute path (only when 2*Cout > K): conv tile + fused BN affine + LeakyReLU.
    acc = _conv_tile(p_ref, w_ref)
    y = acc * scale_ref[...] + shift_ref[...]
    if act:
        y = jnp.where(y >= 0, y, 0.01 * y)
    o_ref[...] = y.astype(o_ref.dtype)


# ------------------------------ tiling helpers ------------------------------


def _round_up(v, m):
    return ((v + m - 1) // m) * m


def _vmem_limit_bytes():
    # Generation-aware scoped-VMEM budget: half of physical VMEM (64 MiB on 128 MiB
    # v5e/v6e, 32 MiB on 64 MiB v7x), conservatively capped.
    cap = 64 * 1024 * 1024  # conservative fallback (v7x physical per TensorCore)
    try:
        info = pltpu.get_tpu_info()
        for name in ("vmem_capacity_bytes", "vmem_size_bytes", "vmem_bytes"):
            v = getattr(info, name, None)
            if v:
                cap = int(v)
                break
    except Exception:
        pass
    return min(cap // 2, 100 * 1024 * 1024)


def _pick_tile(hw, K, Cout, in_bytes, cache_bytes, vmem_limit):
    # Largest multiple-of-256 lane tile such that (pass-1, worst case):
    #   double-buffered patches  2*K*tm*in_bytes
    # + (possibly double-buffered) weights 2*Cout*K*in_bytes
    # + double-buffered conv cache 2*Cout*tm*cache_bytes
    # + f32 accumulator Cout*tm*4
    # fits in ~75% of the scoped budget.
    budget = int(0.75 * vmem_limit)
    w_bytes = 2 * Cout * K * in_bytes
    per_col = 2 * K * in_bytes + Cout * (2 * cache_bytes + 4)
    tm = max(256, (budget - w_bytes) // max(per_col, 1))
    tm = min(tm, _round_up(hw, 256))       # no point exceeding the per-image extent
    return max(256, (tm // 256) * 256)


# --------------------------------- wrapper ----------------------------------


def cbr_forward(x_nchw, weight_oihw, bias, gamma, beta, *,
                circular_padding, filter_size=3, padding_size=1,
                stride=1, groups=1, act=True, eps=1e-5,
                compute_dtype=jnp.bfloat16, out_dtype=None):
    # TODO(synk): stride > 1 and groups > 1 are not implemented (module defaults used).
    assert stride == 1 and groups == 1
    # Conv bias cancels exactly under train-mode BatchNorm (batch-mean subtraction).
    # TODO(synk): if eval-mode BN (running stats) is ever needed, fold bias into `shift`.
    del bias

    Cout, Cin, KH, KW = weight_oihw.shape
    assert (KH, KW) == (filter_size, filter_size)
    p = padding_size
    out_dtype = x_nchw.dtype if out_dtype is None else out_dtype

    # Cast to the MXU compute dtype up front: halves HBM traffic of the im2col build and
    # of the kernel's dominant patch stream.  Epilogue stays in f32.
    x = x_nchw.astype(compute_dtype)
    if circular_padding:                   # circular on W, zeros on H  (torch padding=(p,0))
        x = jnp.concatenate([x[..., -p:], x, x[..., :p]], axis=3)
        x = jnp.pad(x, ((0, 0), (0, 0), (p, p), (0, 0)))
    else:                                  # zeros on both              (torch padding=(p,p))
        x = jnp.pad(x, ((0, 0), (0, 0), (p, p), (p, p)))
    N, _, Hp, Wp = x.shape
    Hout, Wout = Hp - KH + 1, Wp - KW + 1
    HW = Hout * Wout
    K = Cin * KH * KW

    in_b = jnp.dtype(compute_dtype).itemsize
    cache_dtype = compute_dtype
    cache_b = jnp.dtype(cache_dtype).itemsize
    vmem_limit = _vmem_limit_bytes()
    tm = _pick_tile(HW, K, Cout, in_b, cache_b, vmem_limit)
    HWp = _round_up(HW, tm)
    n_hw = HWp // tm
    grid = (N, n_hw)

    # im2col patches in (N, K, HW) layout — k ordered (ci, kh, kw) to match torch's
    # weight.reshape(Cout, Cin*KH*KW).  No (K, M) transpose and no output transpose
    # thanks to the (N, HW-tile) grid.
    # TODO(synk): for very large activations move the pad + patch gather into the kernel
    # (index_map-shifted windows over padded x) to eliminate this 9x im2col HBM pass.
    slabs = jnp.stack([x[:, :, kh:kh + Hout, kw:kw + Wout]
                       for kh in range(KH) for kw in range(KW)], axis=2)
    patches = slabs.reshape(N, K, HW)
    if HWp != HW:
        # Zero columns contribute 0 to both stats sums; their outputs are sliced away.
        patches = jnp.pad(patches, ((0, 0), (0, 0), (0, HWp - HW)))

    w2 = weight_oihw.reshape(Cout, K).astype(compute_dtype)

    cparams = pltpu.CompilerParams(
        dimension_semantics=("parallel", "parallel"),
        vmem_limit_bytes=int(vmem_limit))

    p_spec = pl.BlockSpec((None, K, tm), lambda n, i: (n, 0, i))
    w_spec = pl.BlockSpec((Cout, K), lambda n, i: (0, 0))        # resident across grid
    cache_spec = pl.BlockSpec((None, Cout, tm), lambda n, i: (n, 0, i))
    stats_spec = pl.BlockSpec((None, None, Cout, 2), lambda n, i: (n, i, 0, 0))
    vec_spec = pl.BlockSpec((Cout, 1), lambda n, i: (0, 0))

    flops_conv = int(2 * Cout * K * N * HWp)
    patch_bytes = int(N * K * HWp * in_b)
    w_bytes = int(Cout * K * in_b)
    cache_bytes = int(N * Cout * HWp * cache_b)
    out_bytes = int(N * Cout * HWp * jnp.dtype(out_dtype).itemsize)
    stats_bytes = int(N * n_hw * Cout * 2 * 4)

    # When K >> Cout (the common case, K = 9*Cin), caching the conv result is far cheaper
    # than re-reading the 9x patch stream and re-running the matmul in pass 2.
    use_cache = (2 * Cout <= K)

    # ---- Pass 1: conv tiles -> per-tile per-channel (sum, sum_sq) [+ conv cache] ----
    if use_cache:
        stats, conv_cache = pl.pallas_call(
            _conv_stats_cache_kernel,
            grid=grid,
            in_specs=[p_spec, w_spec],
            out_specs=[stats_spec, cache_spec],
            out_shape=(jax.ShapeDtypeStruct((N, n_hw, Cout, 2), jnp.float32),
                       jax.ShapeDtypeStruct((N, Cout, HWp), cache_dtype)),
            compiler_params=cparams,
            cost_estimate=pl.CostEstimate(
                flops=flops_conv, transcendentals=0,
                bytes_accessed=patch_bytes + w_bytes + cache_bytes + stats_bytes),
        )(patches, w2)
    else:
        stats = pl.pallas_call(
            _conv_stats_kernel,
            grid=grid,
            in_specs=[p_spec, w_spec],
            out_specs=stats_spec,
            out_shape=jax.ShapeDtypeStruct((N, n_hw, Cout, 2), jnp.float32),
            compiler_params=cparams,
            cost_estimate=pl.CostEstimate(
                flops=flops_conv, transcendentals=0,
                bytes_accessed=patch_bytes + w_bytes + stats_bytes),
        )(patches, w2)

    # Tiny cross-tile combine + fused BN coefficients (per-channel scalars) in f32.
    # NOTE: variance via E[x^2]-E[x]^2 in f32 (guarded by max(.,0)); fine here since the
    # conv outputs are near zero-mean with the bias folded out.
    cnt = jnp.float32(N * HW)
    mean = jnp.sum(stats[..., 0], axis=(0, 1)) / cnt
    var = jnp.maximum(jnp.sum(stats[..., 1], axis=(0, 1)) / cnt - mean * mean, 0.0)
    scale = gamma.astype(jnp.float32) * jax.lax.rsqrt(var + eps)
    shift = beta.astype(jnp.float32) - mean * scale
    scale2 = scale.reshape(Cout, 1)
    shift2 = shift.reshape(Cout, 1)

    # ---- Pass 2: fused BN affine + LeakyReLU (pure VPU over the cache, or recompute) ----
    if use_cache:
        out3d = pl.pallas_call(
            functools.partial(_bn_act_kernel, act=act),
            grid=grid,
            in_specs=[cache_spec, vec_spec, vec_spec],
            out_specs=cache_spec,
            out_shape=jax.ShapeDtypeStruct((N, Cout, HWp), out_dtype),
            compiler_params=cparams,
            cost_estimate=pl.CostEstimate(
                flops=int(4 * Cout * N * HWp), transcendentals=0,
                bytes_accessed=cache_bytes + out_bytes + int(8 * Cout)),
        )(conv_cache, scale2, shift2)
    else:
        out3d = pl.pallas_call(
            functools.partial(_conv_bn_act_kernel, act=act),
            grid=grid,
            in_specs=[p_spec, w_spec, vec_spec, vec_spec],
            out_specs=cache_spec,
            out_shape=jax.ShapeDtypeStruct((N, Cout, HWp), out_dtype),
            compiler_params=cparams,
            cost_estimate=pl.CostEstimate(
                flops=flops_conv + int(4 * Cout * N * HWp), transcendentals=0,
                bytes_accessed=patch_bytes + w_bytes + out_bytes),
        )(patches, w2, scale2, shift2)

    out = out3d[:, :, :HW] if HWp != HW else out3d
    return out.reshape(N, Cout, Hout, Wout)                      # already NCHW, no transpose


# -------------------------------- reference ---------------------------------


def cbr_reference(x_nchw, weight_oihw, bias, gamma, beta, *,
                  circular_padding, padding_size=1, act=True):
    p = padding_size
    x = x_nchw
    if circular_padding:
        x = jnp.concatenate([x[..., -p:], x, x[..., :p]], axis=-1)
        pad = ((p, p), (0, 0))
    else:
        pad = ((p, p), (p, p))
    y = jax.lax.conv_general_dilated(
        x, weight_oihw, window_strides=(1, 1), padding=pad,
        dimension_numbers=('NCHW', 'OIHW', 'NCHW'))
    y = y + bias.reshape(1, -1, 1, 1)
    m = jnp.mean(y, axis=(0, 2, 3), keepdims=True)
    v = jnp.mean((y - m) ** 2, axis=(0, 2, 3), keepdims=True)
    y = (y - m) * jax.lax.rsqrt(v + 1e-5)
    y = y * gamma.reshape(1, -1, 1, 1) + beta.reshape(1, -1, 1, 1)
    if act:
        y = jnp.where(y >= 0, y, 0.01 * y)
    return y


# ----------------------------------- main ------------------------------------


if __name__ == "__main__":
    def make_inputs(key, N, Cin, Cout, H, W, KH=3):
        kx, kw, kb = jax.random.split(key, 3)
        x = jax.random.normal(kx, (N, Cin, H, W), dtype=jnp.float32)
        weight = 0.1 * jax.random.normal(kw, (Cout, Cin, KH, KH), dtype=jnp.float32)
        bias = 0.1 * jax.random.normal(kb, (Cout,), dtype=jnp.float32)
        gamma = jnp.ones((Cout,), dtype=jnp.float32)   # fresh BatchNorm2d: weight = 1
        beta = jnp.zeros((Cout,), dtype=jnp.float32)   # fresh BatchNorm2d: bias = 0
        return x, weight, bias, gamma, beta

    # (name, circular, Cin, Cout, compute_dtype, tolerance)
    configs = [
        ("circular-bf16-cache",  True,  4, 8,  jnp.bfloat16, 3e-2),  # default perf path
        ("circular-f32-cache",   True,  4, 8,  jnp.float32,  1e-4),  # exact path
        ("zeros-f32-recompute",  False, 2, 16, jnp.float32,  1e-4),  # 2*Cout > K path
    ]

    key = jax.random.PRNGKey(0)
    for name, circ, Cin, Cout, cdt, tol in configs:
        key, sub = jax.random.split(key)
        x, weight, bias, gamma, beta = make_inputs(sub, 2, Cin, Cout, 16, 16)
        fwd = jax.jit(functools.partial(
            cbr_forward, circular_padding=circ, filter_size=3, padding_size=1,
            stride=1, groups=1, act=True, compute_dtype=cdt))
        out = jax.block_until_ready(fwd(x, weight, bias, gamma, beta))
        ref = cbr_reference(x, weight, bias, gamma, beta,
                            circular_padding=circ, padding_size=1, act=True)
        assert out.shape == (2, Cout, 16, 16), name
        err = float(jnp.max(jnp.abs(out - ref)))
        assert jnp.allclose(out, ref, atol=tol, rtol=tol), (name, err)

    print("KERNEL_OK")
</pallas_src>

<mosaic_0001>
module attributes {stable_mosaic.version = 11 : i64} {
  func.func @_conv_stats_cache_kernel(%arg0: i32, %arg1: i32, %arg2: memref<1x36x256xbf16, #tpu.memory_space<vmem>>, %arg3: memref<8x36xbf16, #tpu.memory_space<vmem>>, %arg4: memref<1x1x8x2xf32, #tpu.memory_space<vmem>>, %arg5: memref<1x8x256xbf16, #tpu.memory_space<vmem>>) attributes {dimension_semantics = [#tpu.dimension_semantics<parallel>, #tpu.dimension_semantics<parallel>], iteration_bounds = array<i64: 2, 1>, scalar_prefetch = 0 : i64, scratch_operands = 0 : i64, tpu.core_type = #tpu.core_type<tc>, window_params = [{transform_indices = @transform_0, window_bounds = array<i64: 1, 36, 256>}, {pipeline_mode = #tpu.pipeline_mode<synchronous>, transform_indices = @transform_1, window_bounds = array<i64: 8, 36>}, {transform_indices = @transform_2, window_bounds = array<i64: 1, 1, 8, 2>}, {transform_indices = @transform_3, window_bounds = array<i64: 1, 8, 256>}]} {
    %c0 = arith.constant 0 : index
    %c0_0 = arith.constant 0 : index
    %0 = vector.load %arg3[%c0, %c0_0] : memref<8x36xbf16, #tpu.memory_space<vmem>>, vector<8x36xbf16>
    %c0_1 = arith.constant 0 : index
    %c0_2 = arith.constant 0 : index
    %c0_3 = arith.constant 0 : index
    %1 = vector.load %arg2[%c0_1, %c0_2, %c0_3] : memref<1x36x256xbf16, #tpu.memory_space<vmem>>, vector<1x36x256xbf16>
    %2 = vector.shape_cast %1 : vector<1x36x256xbf16> to vector<36x256xbf16>
    %cst = arith.constant dense<0.000000e+00> : vector<8x256xf32>
    %3 = tpu.matmul %0, %2, %cst {dimension_numbers = #tpu.dot_dimension_numbers<[1], [0], [0], [1], [0, 0, 1, 1], [], []>} : vector<8x36xbf16>, vector<36x256xbf16>, vector<8x256xf32> -> vector<8x256xf32>
    %4 = arith.truncf %3 : vector<8x256xf32> to vector<8x256xbf16>
    %c0_4 = arith.constant 0 : index
    %c0_5 = arith.constant 0 : index
    %c0_6 = arith.constant 0 : index
    %5 = vector.load %arg5[%c0_4, %c0_5, %c0_6] : memref<1x8x256xbf16, #tpu.memory_space<vmem>>, vector<1x8x256xbf16>
    %6 = vector.shape_cast %5 : vector<1x8x256xbf16> to vector<8x256xbf16>
    %7 = vector.shape_cast %4 : vector<8x256xbf16> to vector<1x8x256xbf16>
    tpu.vector_store %arg5[%c0_4, %c0_5, %c0_6], %7 {strides = array<i32>} : memref<1x8x256xbf16, #tpu.memory_space<vmem>>, vector<1x8x256xbf16>,
    %cst_7 = arith.constant dense<0.000000e+00> : vector<8xf32>
    %8 = vector.multi_reduction <add>, %3, %cst_7 [1] : vector<8x256xf32> to vector<8xf32>
    %9 = vector.shape_cast %8 : vector<8xf32> to vector<8x1xf32>
    %c0_8 = arith.constant 0 : index
    %c0_9 = arith.constant 0 : index
    %c0_10 = arith.constant 0 : index
    %c0_11 = arith.constant 0 : index
    %10 = vector.load %arg4[%c0_8, %c0_9, %c0_10, %c0_11] : memref<1x1x8x2xf32, #tpu.memory_space<vmem>>, vector<1x1x8x1xf32>
    %11 = vector.shape_cast %10 : vector<1x1x8x1xf32> to vector<8x1xf32>
    %12 = vector.shape_cast %9 : vector<8x1xf32> to vector<1x1x8x1xf32>
    tpu.vector_store %arg4[%c0_8, %c0_9, %c0_10, %c0_11], %12 {strides = array<i32>} : memref<1x1x8x2xf32, #tpu.memory_space<vmem>>, vector<1x1x8x1xf32>,
    %13 = arith.mulf %3, %3 : vector<8x256xf32>
    %cst_12 = arith.constant dense<0.000000e+00> : vector<8xf32>
    %14 = vector.multi_reduction <add>, %13, %cst_12 [1] : vector<8x256xf32> to vector<8xf32>
    %15 = vector.shape_cast %14 : vector<8xf32> to vector<8x1xf32>
    %c0_13 = arith.constant 0 : index
    %c0_14 = arith.constant 0 : index
    %c0_15 = arith.constant 0 : index
    %c1 = arith.constant 1 : index
    %16 = vector.load %arg4[%c0_13, %c0_14, %c0_15, %c1] : memref<1x1x8x2xf32, #tpu.memory_space<vmem>>, vector<1x1x8x1xf32>
    %17 = vector.shape_cast %16 : vector<1x1x8x1xf32> to vector<8x1xf32>
    %18 = vector.shape_cast %15 : vector<8x1xf32> to vector<1x1x8x1xf32>
    tpu.vector_store %arg4[%c0_13, %c0_14, %c0_15, %c1], %18 {strides = array<i32>} : memref<1x1x8x2xf32, #tpu.memory_space<vmem>>, vector<1x1x8x1xf32>,
    return
  }
  func.func @transform_0(%arg0: i32, %arg1: i32) -> (i32, i32, i32) {
    %c0_i32 = arith.constant 0 : i32
    %c0_i32_0 = arith.constant 0 : i32
    return %arg0, %c0_i32, %arg1 : i32, i32, i32
  }
  func.func @transform_1(%arg0: i32, %arg1: i32) -> (i32, i32) {
    %c0_i32 = arith.constant 0 : i32
    %c0_i32_0 = arith.constant 0 : i32
    %c0_i32_1 = arith.constant 0 : i32
    return %c0_i32, %c0_i32_0 : i32, i32
  }
  func.func @transform_2(%arg0: i32, %arg1: i32) -> (i32, i32, i32, i32) {
    %c0_i32 = arith.constant 0 : i32
    %c0_i32_0 = arith.constant 0 : i32
    %c0_i32_1 = arith.constant 0 : i32
    return %arg0, %arg1, %c0_i32, %c0_i32_0 : i32, i32, i32, i32
  }
  func.func @transform_3(%arg0: i32, %arg1: i32) -> (i32, i32, i32) {
    %c0_i32 = arith.constant 0 : i32
    %c0_i32_0 = arith.constant 0 : i32
    return %arg0, %c0_i32, %arg1 : i32, i32, i32
  }
}

module attributes {stable_mosaic.version = 11 : i64} {
  func.func @_bn_act_kernel(%arg0: i32, %arg1: i32, %arg2: memref<1x8x256xbf16, #tpu.memory_space<vmem>>, %arg3: memref<8x1xf32, #tpu.memory_space<vmem>>, %arg4: memref<8x1xf32, #tpu.memory_space<vmem>>, %arg5: memref<1x8x256xf32, #tpu.memory_space<vmem>>) attributes {dimension_semantics = [#tpu.dimension_semantics<parallel>, #tpu.dimension_semantics<parallel>], iteration_bounds = array<i64: 2, 1>, scalar_prefetch = 0 : i64, scratch_operands = 0 : i64, tpu.core_type = #tpu.core_type<tc>, window_params = [{transform_indices = @transform_0, window_bounds = array<i64: 1, 8, 256>}, {pipeline_mode = #tpu.pipeline_mode<synchronous>, transform_indices = @transform_1, window_bounds = array<i64: 8, 1>}, {pipeline_mode = #tpu.pipeline_mode<synchronous>, transform_indices = @transform_2, window_bounds = array<i64: 8, 1>}, {transform_indices = @transform_3, window_bounds = array<i64: 1, 8, 256>}]} {
    %c0 = arith.constant 0 : index
    %c0_0 = arith.constant 0 : index
    %c0_1 = arith.constant 0 : index
    %0 = vector.load %arg2[%c0, %c0_0, %c0_1] : memref<1x8x256xbf16, #tpu.memory_space<vmem>>, vector<1x8x256xbf16>
    %1 = vector.shape_cast %0 : vector<1x8x256xbf16> to vector<8x256xbf16>
    %2 = arith.extf %1 : vector<8x256xbf16> to vector<8x256xf32>
    %c0_2 = arith.constant 0 : index
    %c0_3 = arith.constant 0 : index
    %3 = vector.load %arg3[%c0_2, %c0_3] : memref<8x1xf32, #tpu.memory_space<vmem>>, vector<8x1xf32>
    %4 = vector.broadcast %3 : vector<8x1xf32> to vector<8x256xf32>
    %5 = arith.mulf %2, %4 : vector<8x256xf32>
    %c0_4 = arith.constant 0 : index
    %c0_5 = arith.constant 0 : index
    %6 = vector.load %arg4[%c0_4, %c0_5] : memref<8x1xf32, #tpu.memory_space<vmem>>, vector<8x1xf32>
    %7 = vector.broadcast %6 : vector<8x1xf32> to vector<8x256xf32>
    %8 = arith.addf %5, %7 : vector<8x256xf32>
    %cst = arith.constant 0.000000e+00 : f32
    %9 = vector.broadcast %cst : f32 to vector<8x256xf32>
    %10 = arith.cmpf oge, %8, %9 : vector<8x256xf32>
    %cst_6 = arith.constant 0.00999999977 : f32
    %11 = vector.broadcast %cst_6 : f32 to vector<8x256xf32>
    %12 = arith.mulf %11, %8 : vector<8x256xf32>
    %13 = arith.select %10, %8, %12 : vector<8x256xi1>, vector<8x256xf32>
    %c0_7 = arith.constant 0 : index
    %c0_8 = arith.constant 0 : index
    %c0_9 = arith.constant 0 : index
    %14 = vector.load %arg5[%c0_7, %c0_8, %c0_9] : memref<1x8x256xf32, #tpu.memory_space<vmem>>, vector<1x8x256xf32>
    %15 = vector.shape_cast %14 : vector<1x8x256xf32> to vector<8x256xf32>
    %16 = vector.shape_cast %13 : vector<8x256xf32> to vector<1x8x256xf32>
    tpu.vector_store %arg5[%c0_7, %c0_8, %c0_9], %16 {strides = array<i32>} : memref<1x8x256xf32, #tpu.memory_space<vmem>>, vector<1x8x256xf32>,
    return
  }
  func.func @transform_0(%arg0: i32, %arg1: i32) -> (i32, i32, i32) {
    %c0_i32 = arith.constant 0 : i32
    %c0_i32_0 = arith.constant 0 : i32
    return %arg0, %c0_i32, %arg1 : i32, i32, i32
  }
  func.func @transform_1(%arg0: i32, %arg1: i32) -> (i32, i32) {
    %c0_i32 = arith.constant 0 : i32
    %c0_i32_0 = arith.constant 0 : i32
    %c0_i32_1 = arith.constant 0 : i32
    return %c0_i32, %c0_i32_0 : i32, i32
  }
  func.func @transform_2(%arg0: i32, %arg1: i32) -> (i32, i32) {
    %c0_i32 = arith.constant 0 : i32
    %c0_i32_0 = arith.constant 0 : i32
    %c0_i32_1 = arith.constant 0 : i32
    return %c0_i32, %c0_i32_0 : i32, i32
  }
  func.func @transform_3(%arg0: i32, %arg1: i32) -> (i32, i32, i32) {
    %c0_i32 = arith.constant 0 : i32
    %c0_i32_0 = arith.constant 0 : i32
    return %arg0, %c0_i32, %arg1 : i32, i32, i32
  }
}

</mosaic_0001>

<llo_original>
// kernel: cbr_forward.2
$region0: #{cbr_forward.2}
  #allocation0 [shape = 'u32[]', space=smem, size = 0x4, offset = 0x4, fixed_abs, tag = 'smem constant byte address 0x4 - core index']
  #allocation1 [shape = 'u32[144,128]{1,0:T(1,128)}', space=vmem, size = 0x12000, scoped, tag = 'internal scratch']
  %s0 = inlined_call_operand.vmem [shape: bf16[2,36,256], index: 0, kind: input, shape index: {}]
  %s1 = inlined_call_operand.vmem [shape: bf16[8,36], index: 1, kind: input, shape index: {}]
  %s2 = inlined_call_operand.vmem [shape: f32[2,1,8,2], index: 2, kind: output, shape index: {0}]
  %s3 = inlined_call_operand.vmem [shape: bf16[2,8,256], index: 3, kind: output, shape index: {1}]
  %4 = xla_tuple %s2, %s3
  %s5 = sld [smem:[#allocation0]]
  $region49: #{cbr_forward.2} parent=0
    _
  %s7 = ssub.s32 1, %s5
  %s8 = scalar_select 0, %s7, %s5
  loop: start=0, step=1, limit=4
  $region2: #{cbr_forward.2} parent=0 // loop_pre_header
    _
  $region3: #{cbr_forward.2} parent=0 // loop_header
    %s10 = sphi 0, %s14
    %p11 = scmp.ge.s32.totalorder %s10, 4
    %s17 = sphi 0, %s29
    %s18 = sphi 0, %s25
    %s19 = sphi 0, %s17
    %s20 = sphi 0, %s18
    %s21 = sphi 0, %s19
    %s22 = sphi 0, %s20
    %s34 = sphi 0, %s36
    %s37 = sphi 0, %s34
    %s38 = sphi 0, %s37
    %s54 = sphi 0, %s38
    %s58 = sphi 0, %s58
    %s60 = sphi 0, %s58
    %s61 = sphi 0, %s60
    %s75 = sphi 0, %s61
    %s83 = sphi 0, %s85
    %s86 = sphi 0, %s83
    %s87 = sphi 0, %s86
    %s103 = sphi 0, %s87
    %s111 = sphi 0, %s113
    %s114 = sphi 0, %s111
    %s115 = sphi 0, %s114
    %s131 = sphi 0, %s115
  $region4: #{cbr_forward.2} parent=0 // loop_header_branch
    %13 = sbr.rel (%p11) target = $region8
  $region5: #{cbr_forward.2} parent=0 // loop_body
    %s15 = ssub.s32 %s10, 1
    %s16 = ssub.s32 %s10, 2
    %s23 = sadd.s32 1, %s18
    %p24 = scmp.ge.s32.totalorder %s23, 1
    %s25 = scalar_select %p24, 0, %s23
    %s26 = sadd.s32 1, %s17
    %s27 = scalar_select %p24, %s26, %s17
    %p28 = scmp.ge.s32.totalorder %s27, 2
    %s29 = scalar_select %p28, 0, %s27
    %s30 = ssub.s32 %s17, %s29
    %s31 = ssub.s32 %s18, %s25
    %s32 = sor.u32 %s30, %s31
    %p33 = scmp.eq.s32.totalorder %s32, 0
    %s35 = sadd.s32 %s34, 1
    %s36 = scalar_select %p33, %s34, %s35
    %p39 = pneg %p33
    %p40 = scmp.eq.s32.totalorder %s10, 1
    %p41 = por %p39, %p40
    %p42 = scmp.ne.s32.totalorder %s34, %s37
    %p43 = scmp.eq.s32.totalorder %s10, 0
    %p44 = por %p42, %p43
    %p45 = scmp.ne.s32.totalorder %s34, %s37
    %p46 = scmp.eq.s32.totalorder %s15, 1
    %p47 = por %p45, %p46
    %p48 = scmp.ne.s32.totalorder %s37, %s38
    %p49 = scmp.eq.s32.totalorder %s15, 0
    %p50 = por %p48, %p49
    %p51 = scmp.ne.s32.totalorder %s37, %s38
    %p52 = scmp.eq.s32.totalorder %s16, 1
    %p53 = por %p51, %p52
    %p55 = scmp.ne.s32.totalorder %s38, %s54
    %p56 = scmp.eq.s32.totalorder %s16, 0
    %p57 = por %p55, %p56
    %s59 = sadd.s32 %s58, 1
    %p62 = scmp.eq.s32.totalorder %s10, 1
    %p63 = scmp.ne.s32.totalorder %s58, %s60
    %p64 = scmp.eq.s32.totalorder %s10, 0
    %p65 = por %p63, %p64
    %p66 = scmp.ne.s32.totalorder %s58, %s60
    %p67 = scmp.eq.s32.totalorder %s15, 1
    %p68 = por %p66, %p67
    %p69 = scmp.ne.s32.totalorder %s60, %s61
    %p70 = scmp.eq.s32.totalorder %s15, 0
    %p71 = por %p69, %p70
    %p72 = scmp.ne.s32.totalorder %s60, %s61
    %p73 = scmp.eq.s32.totalorder %s16, 1
    %p74 = por %p72, %p73
    %p76 = scmp.ne.s32.totalorder %s61, %s75
    %p77 = scmp.eq.s32.totalorder %s16, 0
    %p78 = por %p76, %p77
    %s79 = ssub.s32 %s17, %s29
    %s80 = ssub.s32 %s18, %s25
    %s81 = sor.u32 %s79, %s80
    %p82 = scmp.eq.s32.totalorder %s81, 0
    %s84 = sadd.s32 %s83, 1
    %s85 = scalar_select %p82, %s83, %s84
    %p88 = pneg %p82
    %p89 = scmp.eq.s32.totalorder %s10, 1
    %p90 = por %p88, %p89
    %p91 = scmp.ne.s32.totalorder %s83, %s86
    %p92 = scmp.eq.s32.totalorder %s10, 0
    %p93 = por %p91, %p92
    %p94 = scmp.ne.s32.totalorder %s83, %s86
    %p95 = scmp.eq.s32.totalorder %s15, 1
    %p96 = por %p94, %p95
    %p97 = scmp.ne.s32.totalorder %s86, %s87
    %p98 = scmp.eq.s32.totalorder %s15, 0
    %p99 = por %p97, %p98
    %p100 = scmp.ne.s32.totalorder %s86, %s87
    %p101 = scmp.eq.s32.totalorder %s16, 1
    %p102 = por %p100, %p101
    %p104 = scmp.ne.s32.totalorder %s87, %s103
    %p105 = scmp.eq.s32.totalorder %s16, 0
    %p106 = por %p104, %p105
    %s107 = ssub.s32 %s17, %s29
    %s108 = ssub.s32 %s18, %s25
    %s109 = sor.u32 %s107, %s108
    %p110 = scmp.eq.s32.totalorder %s109, 0
    %s112 = sadd.s32 %s111, 1
    %s113 = scalar_select %p110, %s111, %s112
    %p116 = pneg %p110
    %p117 = scmp.eq.s32.totalorder %s10, 1
    %p118 = por %p116, %p117
    %p119 = scmp.ne.s32.totalorder %s111, %s114
    %p120 = scmp.eq.s32.totalorder %s10, 0
    %p121 = por %p119, %p120
    %p122 = scmp.ne.s32.totalorder %s111, %s114
    %p123 = scmp.eq.s32.totalorder %s15, 1
    %p124 = por %p122, %p123
    %p125 = scmp.ne.s32.totalorder %s114, %s115
    %p126 = scmp.eq.s32.totalorder %s15, 0
    %p127 = por %p125, %p126
    %p128 = scmp.ne.s32.totalorder %s114, %s115
    %p129 = scmp.eq.s32.totalorder %s16, 1
    %p130 = por %p128, %p129
    %p132 = scmp.ne.s32.totalorder %s115, %s131
    %p133 = scmp.eq.s32.totalorder %s16, 0
    %p134 = por %p132, %p133
    %p135 = scmp.le.s32.totalorder 1, %s10
    %p136 = scmp.lt.s32.totalorder %s10, 3
    %p137 = pnand %p135, %p136
    %p138 = pneg %p137
    // Predicated region
    $region9: #{cbr_forward.2} parent=5 // pred_check
      _
    $region10: #{cbr_forward.2} parent=5 // pred_check_branch
      %140 = sbr.rel (%p137) target = $region12
    $region11: #{cbr_forward.2} parent=5 // pred_region
      %s141 = ssub.s32 %s10, 1
      // Predicated region
      $region13: #{cbr_forward.2} parent=11 // pred_check
        %p142 = pneg %p71
      $region14: #{cbr_forward.2} parent=11 // pred_check_branch
        %144 = sbr.rel (%p142) target = $region16
      $region15: #{cbr_forward.2} parent=11 // pred_region
        _
      $region16: #{cbr_forward.2} parent=11 // pred_fallthru
        _
    $region12: #{cbr_forward.2} parent=5 // pred_fallthru
      _
    %p145 = scmp.lt.s32.totalorder %s10, 2
    // Predicated region
    $region17: #{cbr_forward.2} parent=5 // pred_check
      %p146 = pneg %p145
    $region18: #{cbr_forward.2} parent=5 // pred_check_branch
      %148 = sbr.rel (%p146) target = $region20
    $region19: #{cbr_forward.2} parent=5 // pred_region
      // Predicated region
      $region21: #{cbr_forward.2} parent=19 // pred_check
        %p149 = pneg %p44
      $region22: #{cbr_forward.2} parent=19 // pred_check_branch
        %151 = sbr.rel (%p149) target = $region24
      $region23: #{cbr_forward.2} parent=19 // pred_region
        %s152 = smul.u32 2, %s18
        %p153 = scmp.lt.s32.totalorder %s17, 1
        %s154 = scalar_select %p153, %s17, 1
        %p155 = scmp.lt.s32.totalorder %s152, 1
        %s156 = scalar_select %p155, %s152, 1
        %s157 = smul.addr %s154, 10
        %s158 = sadd.s32 %s156, %s157
        %s159 = smul.addr %s158, 4
        %s160 = scalar_lea.vmem %s0, %s159
        %s161 = smul.u32 2, %s18
      $region24: #{cbr_forward.2} parent=19 // pred_fallthru
        _
    $region20: #{cbr_forward.2} parent=5 // pred_fallthru
      _
    %p162 = scmp.le.s32.totalorder 1, %s10
    %p163 = scmp.lt.s32.totalorder %s10, 3
    %p164 = pnand %p162, %p163
    %p165 = pneg %p164
    // Predicated region
    $region25: #{cbr_forward.2} parent=5 // pred_check
      _
    $region26: #{cbr_forward.2} parent=5 // pred_check_branch
      %167 = sbr.rel (%p164) target = $region28
    $region27: #{cbr_forward.2} parent=5 // pred_region
      %s168 = ssub.s32 %s10, 1
      %s169 = smul.u32 2, %s20
      %p170 = scmp.lt.s32.totalorder %s19, 1
      %s171 = scalar_select %p170, %s19, 1
      %p172 = scmp.lt.s32.totalorder %s169, 1
      %s173 = scalar_select %p172, %s169, 1
      %s174 = smul.addr %s171, 10
      %s175 = sadd.s32 %s173, %s174
      %s176 = smul.addr %s175, 4
      %s177 = scalar_lea.vmem %s0, %s176
      %p178 = pneg %p50
      %p179 = pneg %p47
      %p180 = pneg %p71
      %p181 = pneg %p68
      %p182 = pneg %p99
      %p183 = pneg %p96
      %p184 = scmp.lt.s32.totalorder %s19, 1
      %s185 = scalar_select %p184, %s19, 1
      %p186 = scmp.lt.s32.totalorder %s20, 0
      %s187 = scalar_select %p186, %s20, 0
      %s188 = sadd.s32 %s187, %s185
      %s189 = smul.addr %s188, 8
      %s190 = scalar_lea.vmem %s2, %s189
      %p191 = pneg %p127
      %p192 = pneg %p124
      %s193 = smul.u32 2, %s20
      %p194 = scmp.lt.s32.totalorder %s19, 1
      %s195 = scalar_select %p194, %s19, 1
      %p196 = scmp.lt.s32.totalorder %s193, 1
      %s197 = scalar_select %p196, %s193, 1
      %s198 = smul.addr %s195, 2
      %s199 = sadd.s32 %s197, %s198
      %s200 = smul.addr %s199, 4
      %s201 = scalar_lea.vmem %s3, %s200
      %s202 = smul.u32 2, %s20
      %p203 = scmp.lt.s32.totalorder %s19, 1
      %s204 = scalar_select %p203, %s19, 1
      %p205 = scmp.lt.s32.totalorder %s202, 1
      %s206 = scalar_select %p205, %s202, 1
      %s207 = smul.addr %s204, 10
      %s208 = sadd.s32 %s206, %s207
      %s209 = smul.addr %s208, 4
      %s210 = scalar_lea.vmem %s0, %s209
      %s211 = smul.u32 2, %s20
      %p212 = scmp.lt.s32.totalorder %s19, 1
      %s213 = scalar_select %p212, %s19, 1
      %p214 = scmp.lt.s32.totalorder %s20, 0
      %s215 = scalar_select %p214, %s20, 0
      %s216 = sadd.s32 %s215, %s213
      %s217 = smul.addr %s216, 8
      %s218 = scalar_lea.vmem %s2, %s217
      %s219 = smul.u32 2, %s20
      %p220 = scmp.lt.s32.totalorder %s19, 1
      %s221 = scalar_select %p220, %s19, 1
      %p222 = scmp.lt.s32.totalorder %s219, 1
      %s223 = scalar_select %p222, %s219, 1
      %s224 = smul.addr %s221, 2
      %s225 = sadd.s32 %s223, %s224
      %s226 = smul.addr %s225, 4
      %s227 = scalar_lea.vmem %s3, %s226
      %s228 = smul.u32 2, %s20
      %v230 = vld [vmem:[%s1] sm:$0xf]
      %v231 = vld [vmem:[%s210] sm:$0xff]
      %v232 = vld [vmem:[%s210 + $0x8] sm:$0xff]
      %v233 = vld [vmem:[%s210 + $0x10] sm:$0xff]
      %v234 = vld [vmem:[%s210 + $0x18] sm:$0xff]
      %v235 = vld [vmem:[%s210 + $0x20] sm:$0x33]
      %v241 = vunpack.c.l.b16 %v231
      %v242 = vunpack.c.h.b16 %v231
      %v243 = vunpack.c.l.b16 %v232
      %v244 = vunpack.c.h.b16 %v232
      %v245 = vunpack.c.l.b16 %v233
      %v246 = vunpack.c.h.b16 %v233
      %v247 = vunpack.c.l.b16 %v234
      %v248 = vunpack.c.h.b16 %v234
      %v249 = vunpack.c.l.b16 %v235
      %v250 = vunpack.c.h.b16 %v235
      %v251 = vpack.c.b16 %v243, %v241
      %v252 = vpack.c.b16 %v244, %v242
      %v253 = vpack.c.b16 %v247, %v245
      %v254 = vpack.c.b16 %v248, %v246
      %v255 = vpack.c.b16 %v249, %v249
      %v256 = vpack.c.b16 %v250, %v250
      %vm261 = vcmask 293888
      %v263 = vsel %vm261, %v230, 0
      %vm265 = vcmask 1041408
      %v267 = vsel %vm265, %v255, 0
      %v270 = vsel %vm265, %v256, 0
      %272 = vmatprep.subr.bf16.mxu0 0
      %273 = vmatpush1.bf16.msra.mxu0 0
      %274 = vmatprep.subr.bf16.mxu0 0
      %275 = vmatpush1.bf16.msra.mxu0 0
      %276 = vmatprep.subr.bf16.mxu0 0
      %277 = vmatpush1.bf16.msra.mxu0 0
      %278 = vmatprep.subr.bf16.mxu0 0
      %279 = vmatpush1.bf16.msra.mxu0 0
      %280 = vmatprep.subr.bf16.mxu0 0
      %281 = vmatpush1.bf16.msra.mxu0 0
      %282 = vmatprep.subr.bf16.mxu0 %v270
      %283 = vmatpush1.bf16.msra.mxu0 %v267
      %284 = vmatprep.subr.bf16.mxu0 %v254
      %285 = vmatpush1.bf16.msra.mxu0 %v253
      %286 = vmatprep.subr.bf16.mxu0 %v252
      %287 = vmatpush1.bf16.msra.mxu0 %v251
      %288 = vmatprep.subr.bf16.mxu0 0
      %289 = vmatpush2.bf16.msra.mxu0 0
      %290 = vmatprep.subr.bf16.mxu0 0
      %291 = vmatpush2.bf16.msra.mxu0 0
      %292 = vmatprep.subr.bf16.mxu0 0
      %293 = vmatpush2.bf16.msra.mxu0 0
      %294 = vmatprep.subr.bf16.mxu0 0
      %295 = vmatpush2.bf16.msra.mxu0 0
      %296 = vmatprep.subr.bf16.mxu0 0
      %297 = vmatpush2.bf16.msra.mxu0 0
      %298 = vmatprep.subr.bf16.mxu0 0
      %299 = vmatpush2.bf16.msra.mxu0 0
      %300 = vmatprep.subr.bf16.mxu0 0
      %301 = vmatpush2.bf16.msra.mxu0 0
      %302 = vmatprep.subr.bf16.mxu0 0
      %303 = vmatpush2.bf16.msra.mxu0 0
      %304 = vmatprep.mubr.bf16.mxu0 0
      %305 = vmatmul.mubr.bf16.gmra.mxu0 %v263
      %v306 = vpop.f32.mrf.mxu0
      %v307 = vadd.f32 0.0, %v306
      %v308 = vpop.f32.mrf.mxu0
      %v309 = vadd.f32 0.0, %v308
      %v310 = vpop.f32.mrf.mxu0
      %v311 = vpop.f32.mrf.mxu0
      %312 = vdwg.mxu0
      %v313 = vpack.c.bf16 %v307, %v307
      %v314 = vpack.c.bf16 %v309, %v309
      %v317 = vunpack.c.l.b16 %v313
      %v318 = vunpack.c.l.b16 %v314
      %v319 = vpack.c.b16 %v318, %v317
      %321 = vst [vmem:[%s227] sm:$0xff] %v319
      %v322 = vadd.f32 %v307, %v309
      %323 = vadd.xlane.f32.xlu0 %v322
      %v324 = vpop.xlane.xlu0 %323
      %vm325 = vcmask 7168
      %326 = vst.msk [vmem:[%s218] sm:$0xff] %vm325, %v324
      %v327 = vmul.f32 %v307, %v307
      %v328 = vmul.f32 %v309, %v309
      %v329 = vadd.f32 %v327, %v328
      %330 = vadd.xlane.f32.xlu0 %v329
      %v331 = vpop.xlane.xlu0 %330
      %vm332 = vcmask 15368
      %333 = vst.msk [vmem:[%s218] sm:$0xff] %vm332, %v331
      %p334 = scmp.lt.s32.totalorder %s19, 1
      %s335 = scalar_select %p334, %s19, 1
      %p336 = scmp.lt.s32.totalorder %s20, 0
      %s337 = scalar_select %p336, %s20, 0
      %s338 = sadd.s32 %s337, %s335
      %s339 = smul.addr %s338, 8
      %s340 = scalar_lea.vmem %s2, %s339
      %s341 = smul.u32 2, %s20
      %p342 = scmp.lt.s32.totalorder %s19, 1
      %s343 = scalar_select %p342, %s19, 1
      %p344 = scmp.lt.s32.totalorder %s341, 1
      %s345 = scalar_select %p344, %s341, 1
      %s346 = smul.addr %s343, 2
      %s347 = sadd.s32 %s345, %s346
      %s348 = smul.addr %s347, 4
      %s349 = scalar_lea.vmem %s3, %s348
      // Predicated region
      $region29: #{cbr_forward.2} parent=27 // pred_check
        %p350 = pneg %p96
      $region30: #{cbr_forward.2} parent=27 // pred_check_branch
        %352 = sbr.rel (%p350) target = $region32
      $region31: #{cbr_forward.2} parent=27 // pred_region
        _
      $region32: #{cbr_forward.2} parent=27 // pred_fallthru
        _
      // Predicated region
      $region33: #{cbr_forward.2} parent=27 // pred_check
        %p353 = pneg %p124
      $region34: #{cbr_forward.2} parent=27 // pred_check_branch
        %355 = sbr.rel (%p353) target = $region36
      $region35: #{cbr_forward.2} parent=27 // pred_region
        %s356 = smul.u32 2, %s20
      $region36: #{cbr_forward.2} parent=27 // pred_fallthru
        _
    $region28: #{cbr_forward.2} parent=5 // pred_fallthru
      _
    %p357 = scmp.le.s32.totalorder 2, %s10
    // Predicated region
    $region37: #{cbr_forward.2} parent=5 // pred_check
      %p358 = pneg %p357
    $region38: #{cbr_forward.2} parent=5 // pred_check_branch
      %360 = sbr.rel (%p358) target = $region40
    $region39: #{cbr_forward.2} parent=5 // pred_region
      %s361 = ssub.s32 %s10, 2
      // Predicated region
      $region41: #{cbr_forward.2} parent=39 // pred_check
        %p362 = pneg %p102
      $region42: #{cbr_forward.2} parent=39 // pred_check_branch
        %364 = sbr.rel (%p362) target = $region44
      $region43: #{cbr_forward.2} parent=39 // pred_region
        %p365 = scmp.lt.s32.totalorder %s21, 1
        %s366 = scalar_select %p365, %s21, 1
        %p367 = scmp.lt.s32.totalorder %s22, 0
        %s368 = scalar_select %p367, %s22, 0
        %s369 = sadd.s32 %s368, %s366
        %s370 = smul.addr %s369, 8
        %s371 = scalar_lea.vmem %s2, %s370
      $region44: #{cbr_forward.2} parent=39 // pred_fallthru
        _
      // Predicated region
      $region45: #{cbr_forward.2} parent=39 // pred_check
        %p372 = pneg %p130
      $region46: #{cbr_forward.2} parent=39 // pred_check_branch
        %374 = sbr.rel (%p372) target = $region48
      $region47: #{cbr_forward.2} parent=39 // pred_region
        %s375 = smul.u32 2, %s22
        %p376 = scmp.lt.s32.totalorder %s21, 1
        %s377 = scalar_select %p376, %s21, 1
        %p378 = scmp.lt.s32.totalorder %s375, 1
        %s379 = scalar_select %p378, %s375, 1
        %s380 = smul.addr %s377, 2
        %s381 = sadd.s32 %s379, %s380
        %s382 = smul.addr %s381, 4
        %s383 = scalar_lea.vmem %s3, %s382
      $region48: #{cbr_forward.2} parent=39 // pred_fallthru
        _
    $region40: #{cbr_forward.2} parent=5 // pred_fallthru
      _
  $region6: #{cbr_forward.2} parent=0 // loop_footer
    %s14 = sadd.s32 1, %s10
  $region7: #{cbr_forward.2} parent=0 // loop_footer_branch
    %9 = sbr.rel target = $region3
  $region8: #{cbr_forward.2} parent=0 // loop_exit
    _

// kernel: cbr_forward.3
$region0: #{cbr_forward.3}
  #allocation0 [shape = 'u32[]', space=smem, size = 0x4, offset = 0x4, fixed_abs, tag = 'smem constant byte address 0x4 - core index']
  #allocation1 [shape = 'u32[144,128]{1,0:T(1,128)}', space=vmem, size = 0x12000, scoped, tag = 'internal scratch']
  %s0 = inlined_call_operand.vmem [shape: bf16[2,8,256], index: 0, kind: input, shape index: {}]
  %s1 = inlined_call_operand.vmem [shape: f32[8,1], index: 1, kind: input, shape index: {}]
  %s2 = inlined_call_operand.vmem [shape: f32[8,1], index: 2, kind: input, shape index: {}]
  %s3 = inlined_call_operand.vmem [shape: f32[2,8,256], index: 3, kind: output, shape index: {}]
  %s4 = sld [smem:[#allocation0]]
  $region45: #{cbr_forward.3} parent=0
    _
  %s6 = ssub.s32 1, %s4
  %s7 = scalar_select 0, %s6, %s4
  loop: start=0, step=1, limit=4
  $region2: #{cbr_forward.3} parent=0 // loop_pre_header
    _
  $region3: #{cbr_forward.3} parent=0 // loop_header
    %s9 = sphi 0, %s13
    %p10 = scmp.ge.s32.totalorder %s9, 4
    %s16 = sphi 0, %s28
    %s17 = sphi 0, %s24
    %s18 = sphi 0, %s16
    %s19 = sphi 0, %s17
    %s20 = sphi 0, %s18
    %s21 = sphi 0, %s19
    %s33 = sphi 0, %s35
    %s36 = sphi 0, %s33
    %s37 = sphi 0, %s36
    %s53 = sphi 0, %s37
    %s57 = sphi 0, %s57
    %s59 = sphi 0, %s57
    %s60 = sphi 0, %s59
    %s74 = sphi 0, %s60
    %s78 = sphi 0, %s78
    %s80 = sphi 0, %s78
    %s81 = sphi 0, %s80
    %s95 = sphi 0, %s81
    %s103 = sphi 0, %s105
    %s106 = sphi 0, %s103
    %s107 = sphi 0, %s106
    %s123 = sphi 0, %s107
  $region4: #{cbr_forward.3} parent=0 // loop_header_branch
    %12 = sbr.rel (%p10) target = $region8
  $region5: #{cbr_forward.3} parent=0 // loop_body
    %s14 = ssub.s32 %s9, 1
    %s15 = ssub.s32 %s9, 2
    %s22 = sadd.s32 1, %s17
    %p23 = scmp.ge.s32.totalorder %s22, 1
    %s24 = scalar_select %p23, 0, %s22
    %s25 = sadd.s32 1, %s16
    %s26 = scalar_select %p23, %s25, %s16
    %p27 = scmp.ge.s32.totalorder %s26, 2
    %s28 = scalar_select %p27, 0, %s26
    %s29 = ssub.s32 %s16, %s28
    %s30 = ssub.s32 %s17, %s24
    %s31 = sor.u32 %s29, %s30
    %p32 = scmp.eq.s32.totalorder %s31, 0
    %s34 = sadd.s32 %s33, 1
    %s35 = scalar_select %p32, %s33, %s34
    %p38 = pneg %p32
    %p39 = scmp.eq.s32.totalorder %s9, 1
    %p40 = por %p38, %p39
    %p41 = scmp.ne.s32.totalorder %s33, %s36
    %p42 = scmp.eq.s32.totalorder %s9, 0
    %p43 = por %p41, %p42
    %p44 = scmp.ne.s32.totalorder %s33, %s36
    %p45 = scmp.eq.s32.totalorder %s14, 1
    %p46 = por %p44, %p45
    %p47 = scmp.ne.s32.totalorder %s36, %s37
    %p48 = scmp.eq.s32.totalorder %s14, 0
    %p49 = por %p47, %p48
    %p50 = scmp.ne.s32.totalorder %s36, %s37
    %p51 = scmp.eq.s32.totalorder %s15, 1
    %p52 = por %p50, %p51
    %p54 = scmp.ne.s32.totalorder %s37, %s53
    %p55 = scmp.eq.s32.totalorder %s15, 0
    %p56 = por %p54, %p55
    %s58 = sadd.s32 %s57, 1
    %p61 = scmp.eq.s32.totalorder %s9, 1
    %p62 = scmp.ne.s32.totalorder %s57, %s59
    %p63 = scmp.eq.s32.totalorder %s9, 0
    %p64 = por %p62, %p63
    %p65 = scmp.ne.s32.totalorder %s57, %s59
    %p66 = scmp.eq.s32.totalorder %s14, 1
    %p67 = por %p65, %p66
    %p68 = scmp.ne.s32.totalorder %s59, %s60
    %p69 = scmp.eq.s32.totalorder %s14, 0
    %p70 = por %p68, %p69
    %p71 = scmp.ne.s32.totalorder %s59, %s60
    %p72 = scmp.eq.s32.totalorder %s15, 1
    %p73 = por %p71, %p72
    %p75 = scmp.ne.s32.totalorder %s60, %s74
    %p76 = scmp.eq.s32.totalorder %s15, 0
    %p77 = por %p75, %p76
    %s79 = sadd.s32 %s78, 1
    %p82 = scmp.eq.s32.totalorder %s9, 1
    %p83 = scmp.ne.s32.totalorder %s78, %s80
    %p84 = scmp.eq.s32.totalorder %s9, 0
    %p85 = por %p83, %p84
    %p86 = scmp.ne.s32.totalorder %s78, %s80
    %p87 = scmp.eq.s32.totalorder %s14, 1
    %p88 = por %p86, %p87
    %p89 = scmp.ne.s32.totalorder %s80, %s81
    %p90 = scmp.eq.s32.totalorder %s14, 0
    %p91 = por %p89, %p90
    %p92 = scmp.ne.s32.totalorder %s80, %s81
    %p93 = scmp.eq.s32.totalorder %s15, 1
    %p94 = por %p92, %p93
    %p96 = scmp.ne.s32.totalorder %s81, %s95
    %p97 = scmp.eq.s32.totalorder %s15, 0
    %p98 = por %p96, %p97
    %s99 = ssub.s32 %s16, %s28
    %s100 = ssub.s32 %s17, %s24
    %s101 = sor.u32 %s99, %s100
    %p102 = scmp.eq.s32.totalorder %s101, 0
    %s104 = sadd.s32 %s103, 1
    %s105 = scalar_select %p102, %s103, %s104
    %p108 = pneg %p102
    %p109 = scmp.eq.s32.totalorder %s9, 1
    %p110 = por %p108, %p109
    %p111 = scmp.ne.s32.totalorder %s103, %s106
    %p112 = scmp.eq.s32.totalorder %s9, 0
    %p113 = por %p111, %p112
    %p114 = scmp.ne.s32.totalorder %s103, %s106
    %p115 = scmp.eq.s32.totalorder %s14, 1
    %p116 = por %p114, %p115
    %p117 = scmp.ne.s32.totalorder %s106, %s107
    %p118 = scmp.eq.s32.totalorder %s14, 0
    %p119 = por %p117, %p118
    %p120 = scmp.ne.s32.totalorder %s106, %s107
    %p121 = scmp.eq.s32.totalorder %s15, 1
    %p122 = por %p120, %p121
    %p124 = scmp.ne.s32.totalorder %s107, %s123
    %p125 = scmp.eq.s32.totalorder %s15, 0
    %p126 = por %p124, %p125
    %p127 = scmp.le.s32.totalorder 1, %s9
    %p128 = scmp.lt.s32.totalorder %s9, 3
    %p129 = pnand %p127, %p128
    %p130 = pneg %p129
    // Predicated region
    $region9: #{cbr_forward.3} parent=5 // pred_check
      _
    $region10: #{cbr_forward.3} parent=5 // pred_check_branch
      %132 = sbr.rel (%p129) target = $region12
    $region11: #{cbr_forward.3} parent=5 // pred_region
      %s133 = ssub.s32 %s9, 1
      // Predicated region
      $region13: #{cbr_forward.3} parent=11 // pred_check
        %p134 = pneg %p70
      $region14: #{cbr_forward.3} parent=11 // pred_check_branch
        %136 = sbr.rel (%p134) target = $region16
      $region15: #{cbr_forward.3} parent=11 // pred_region
        _
      $region16: #{cbr_forward.3} parent=11 // pred_fallthru
        _
      // Predicated region
      $region17: #{cbr_forward.3} parent=11 // pred_check
        %p137 = pneg %p91
      $region18: #{cbr_forward.3} parent=11 // pred_check_branch
        %139 = sbr.rel (%p137) target = $region20
      $region19: #{cbr_forward.3} parent=11 // pred_region
        _
      $region20: #{cbr_forward.3} parent=11 // pred_fallthru
        _
    $region12: #{cbr_forward.3} parent=5 // pred_fallthru
      _
    %p140 = scmp.lt.s32.totalorder %s9, 2
    // Predicated region
    $region21: #{cbr_forward.3} parent=5 // pred_check
      %p141 = pneg %p140
    $region22: #{cbr_forward.3} parent=5 // pred_check_branch
      %143 = sbr.rel (%p141) target = $region24
    $region23: #{cbr_forward.3} parent=5 // pred_region
      // Predicated region
      $region25: #{cbr_forward.3} parent=23 // pred_check
        %p144 = pneg %p43
      $region26: #{cbr_forward.3} parent=23 // pred_check_branch
        %146 = sbr.rel (%p144) target = $region28
      $region27: #{cbr_forward.3} parent=23 // pred_region
        %s147 = smul.u32 2, %s17
        %p148 = scmp.lt.s32.totalorder %s16, 1
        %s149 = scalar_select %p148, %s16, 1
        %p150 = scmp.lt.s32.totalorder %s147, 1
        %s151 = scalar_select %p150, %s147, 1
        %s152 = smul.addr %s149, 2
        %s153 = sadd.s32 %s151, %s152
        %s154 = smul.addr %s153, 4
        %s155 = scalar_lea.vmem %s0, %s154
        %s156 = smul.u32 2, %s17
      $region28: #{cbr_forward.3} parent=23 // pred_fallthru
        _
    $region24: #{cbr_forward.3} parent=5 // pred_fallthru
      _
    %p157 = scmp.le.s32.totalorder 1, %s9
    %p158 = scmp.lt.s32.totalorder %s9, 3
    %p159 = pnand %p157, %p158
    %p160 = pneg %p159
    // Predicated region
    $region29: #{cbr_forward.3} parent=5 // pred_check
      _
    $region30: #{cbr_forward.3} parent=5 // pred_check_branch
      %162 = sbr.rel (%p159) target = $region32
    $region31: #{cbr_forward.3} parent=5 // pred_region
      %s163 = ssub.s32 %s9, 1
      %s164 = smul.u32 2, %s19
      %p165 = scmp.lt.s32.totalorder %s18, 1
      %s166 = scalar_select %p165, %s18, 1
      %p167 = scmp.lt.s32.totalorder %s164, 1
      %s168 = scalar_select %p167, %s164, 1
      %s169 = smul.addr %s166, 2
      %s170 = sadd.s32 %s168, %s169
      %s171 = smul.addr %s170, 4
      %s172 = scalar_lea.vmem %s0, %s171
      %p173 = pneg %p49
      %p174 = pneg %p46
      %p175 = pneg %p70
      %p176 = pneg %p67
      %p177 = pneg %p91
      %p178 = pneg %p88
      %p179 = pneg %p119
      %p180 = pneg %p116
      %s181 = smul.u32 2, %s19
      %p182 = scmp.lt.s32.totalorder %s18, 1
      %s183 = scalar_select %p182, %s18, 1
      %p184 = scmp.lt.s32.totalorder %s181, 1
      %s185 = scalar_select %p184, %s181, 1
      %s186 = smul.addr %s183, 2
      %s187 = sadd.s32 %s185, %s186
      %s188 = smul.addr %s187, 8
      %s189 = scalar_lea.vmem %s3, %s188
      %s190 = smul.u32 2, %s19
      %p191 = scmp.lt.s32.totalorder %s18, 1
      %s192 = scalar_select %p191, %s18, 1
      %p193 = scmp.lt.s32.totalorder %s190, 1
      %s194 = scalar_select %p193, %s190, 1
      %s195 = smul.addr %s192, 2
      %s196 = sadd.s32 %s194, %s195
      %s197 = smul.addr %s196, 4
      %s198 = scalar_lea.vmem %s0, %s197
      %s199 = smul.u32 2, %s19
      %s200 = smul.u32 2, %s19
      %p201 = scmp.lt.s32.totalorder %s18, 1
      %s202 = scalar_select %p201, %s18, 1
      %p203 = scmp.lt.s32.totalorder %s200, 1
      %s204 = scalar_select %p203, %s200, 1
      %s205 = smul.addr %s202, 2
      %s206 = sadd.s32 %s204, %s205
      %s207 = smul.addr %s206, 8
      %s208 = scalar_lea.vmem %s3, %s207
      %s209 = smul.u32 2, %s19
      %v210 = vld [vmem:[%s198] sm:$0xff]
      %v211 = vunpack.c.l.bf16 %v210
      %v212 = vunpack.c.h.bf16 %v210
      %v213 = vld [vmem:[%s1] sm:$0xff]
      %215 = vset.pattern.permute.xlu0 0
      %216 = vperm.xlu0 %215, %v213
      %v217 = vpop.permute.xlu0 %216
      %v219 = vmul.f32 %v211, %v217
      %v220 = vmul.f32 %v212, %v217
      %v221 = vld [vmem:[%s2] sm:$0xff]
      %223 = vset.pattern.permute.xlu0 0
      %224 = vperm.xlu0 %223, %v221
      %v225 = vpop.permute.xlu0 %224
      %v227 = vadd.f32 %v219, %v225
      %v228 = vadd.f32 %v220, %v225
      %vm229 = vcmp.ge.f32.partialorder %v227, 0.0
      %vm230 = vcmp.ge.f32.partialorder %v228, 0.0
      %v231 = vmul.f32 %v227, 0.01
      %v232 = vmul.f32 %v228, 0.01
      %v233 = vsel %vm229, %v227, %v231
      %v234 = vsel %vm230, %v228, %v232
      %235 = vst [vmem:[%s208] sm:$0xff] %v233
      %236 = vst [vmem:[%s208 + $0x8] sm:$0xff] %v234
      %s237 = smul.u32 2, %s19
      %p238 = scmp.lt.s32.totalorder %s18, 1
      %s239 = scalar_select %p238, %s18, 1
      %p240 = scmp.lt.s32.totalorder %s237, 1
      %s241 = scalar_select %p240, %s237, 1
      %s242 = smul.addr %s239, 2
      %s243 = sadd.s32 %s241, %s242
      %s244 = smul.addr %s243, 8
      %s245 = scalar_lea.vmem %s3, %s244
      // Predicated region
      $region33: #{cbr_forward.3} parent=31 // pred_check
        %p246 = pneg %p116
      $region34: #{cbr_forward.3} parent=31 // pred_check_branch
        %248 = sbr.rel (%p246) target = $region36
      $region35: #{cbr_forward.3} parent=31 // pred_region
        %s249 = smul.u32 2, %s19
      $region36: #{cbr_forward.3} parent=31 // pred_fallthru
        _
    $region32: #{cbr_forward.3} parent=5 // pred_fallthru
      _
    %p250 = scmp.le.s32.totalorder 2, %s9
    // Predicated region
    $region37: #{cbr_forward.3} parent=5 // pred_check
      %p251 = pneg %p250
    $region38: #{cbr_forward.3} parent=5 // pred_check_branch
      %253 = sbr.rel (%p251) target = $region40
    $region39: #{cbr_forward.3} parent=5 // pred_region
      %s254 = ssub.s32 %s9, 2
      // Predicated region
      $region41: #{cbr_forward.3} parent=39 // pred_check
        %p255 = pneg %p122
      $region42: #{cbr_forward.3} parent=39 // pred_check_branch
        %257 = sbr.rel (%p255) target = $region44
      $region43: #{cbr_forward.3} parent=39 // pred_region
        %s258 = smul.u32 2, %s21
        %p259 = scmp.lt.s32.totalorder %s20, 1
        %s260 = scalar_select %p259, %s20, 1
        %p261 = scmp.lt.s32.totalorder %s258, 1
        %s262 = scalar_select %p261, %s258, 1
        %s263 = smul.addr %s260, 2
        %s264 = sadd.s32 %s262, %s263
        %s265 = smul.addr %s264, 8
        %s266 = scalar_lea.vmem %s3, %s265
      $region44: #{cbr_forward.3} parent=39 // pred_fallthru
        _
    $region40: #{cbr_forward.3} parent=5 // pred_fallthru
      _
  $region6: #{cbr_forward.3} parent=0 // loop_footer
    %s13 = sadd.s32 1, %s9
  $region7: #{cbr_forward.3} parent=0 // loop_footer_branch
    %8 = sbr.rel target = $region3
  $region8: #{cbr_forward.3} parent=0 // loop_exit
    _

</llo_original>
